<compile_context>
chip_gen: v6e
topology: v6e:2x2x1
jax: 0.10.0
libtpu: 0.0.40
codegen_flags: <defaults>
</compile_context>

<pallas_src>
import functools
import math

import jax
import jax.numpy as jnp
import numpy as np
from jax import lax
from jax.experimental import pallas as pl
from jax.experimental.pallas import tpu as pltpu

_SQRT2 = math.sqrt(2.0)
_K = math.sqrt(2.0 / math.pi)        # tanh-CDF linear coefficient
_C3 = 0.044715 * _K                  # tanh-CDF cubic coefficient (k folded in)
_CHUNK = 16                          # samples per inner-loop iteration (bf16-tile aligned)


def _phi_tanh_term(z):
    """tanh-form standard normal CDF, WITHOUT the affine part.

    Phi(z) ~= 0.5 * (1 + tanh(sqrt(2/pi) * (z + 0.044715*z^3)))
    Only tanh(...) is accumulated; the 0.5's are folded into finalize.
    ~6 VALU ops + 1 EUP op per element.
    """
    z2 = z * z
    return jnp.tanh(z * (_K + _C3 * z2))


def _erfinv(x):
    # Giles (2010) single-precision erfinv approximation (finalize-only, once per tile).
    w = -jnp.log((1.0 - x) * (1.0 + x))

    ws = w - 2.5
    ps = jnp.full_like(w, 2.81022636e-08)
    for c in (3.43273939e-07, -3.5233877e-06, -4.39150654e-06, 0.00021858087,
              -0.00125372503, -0.00417768164, 0.246640727, 1.50140941):
        ps = c + ps * ws

    wb = jnp.sqrt(w) - 3.0
    pb = jnp.full_like(w, -0.000200214257)
    for c in (0.000100950558, 0.00134934322, -0.00367342844, 0.00573950773,
              -0.0076224613, 0.00943887047, 1.00167406, 2.83297682):
        pb = c + pb * wb

    return jnp.where(w < 5.0, ps, pb) * x


def _pit_kernel(x_ref, d_ref, bw_ref, o_ref, acc_ref, xs_ref, ibw_ref, *,
                s_total, s_blk, n_s_blocks, chunk, normal_backtransform):
    s_i = pl.program_id(2)

    # Per-(batch, feature)-tile init: reciprocal bandwidth and the pre-scaled x,
    # hoisted out of the per-sample-block body.
    @pl.when(s_i == 0)
    def _():
        bw = bw_ref[...].astype(jnp.float32)            # (1, tf)
        ibw = 1.0 / bw                                  # tiny: exact divide, once per tile
        ibw_ref[...] = ibw
        xs_ref[...] = x_ref[...].astype(jnp.float32) * ibw

    xs = xs_ref[...]        # (tb, tf) = x / bw
    ibw = ibw_ref[...]      # (1, tf)

    def chunk_body(c, acc):
        base = pl.multiple_of(c * chunk, chunk)
        # (chunk, tf): one broadcast multiply per streamed chunk; everything stays 2-D.
        dc = d_ref[pl.ds(base, chunk), :].astype(jnp.float32) * ibw
        for j in range(chunk):                           # static unroll inside the body
            acc = acc + _phi_tanh_term(xs - dc[j:j + 1, :])   # (tb, tf)
        return acc

    n_full = s_blk // chunk
    rem = s_blk % chunk

    acc = jnp.zeros(xs.shape, jnp.float32)
    if n_full > 0:
        acc = lax.fori_loop(0, n_full, chunk_body, acc)
    if rem > 0:  # static tail for sample counts not divisible by the chunk
        dt = d_ref[pl.ds(n_full * chunk, rem), :].astype(jnp.float32) * ibw
        for j in range(rem):
            acc = acc + _phi_tanh_term(xs - dt[j:j + 1, :])

    def _finalize(total):
        if normal_backtransform:
            eps = 2e-6
            # (1/S) * sum tanh(...) == 2u - 1; clamp so erfinv stays finite out-of-support.
            v = jnp.clip(total * (1.0 / float(s_total)), -1.0 + eps, 1.0 - eps)
            out = _SQRT2 * _erfinv(v)
        else:
            out = total * (0.5 / float(s_total))         # == u - 0.5
        o_ref[...] = out.astype(o_ref.dtype)

    if n_s_blocks == 1:
        # Single sample block per tile: skip the cross-step accumulator entirely.
        _finalize(acc)
    else:
        @pl.when(s_i == 0)
        def _():
            acc_ref[...] = acc

        @pl.when(s_i > 0)
        def _():
            acc_ref[...] += acc

        @pl.when(s_i == n_s_blocks - 1)
        def _():
            _finalize(acc_ref[...])


def _pick_block(dim, cap, align):
    """Largest divisor of `dim` that is <= cap and a multiple of `align`;
    otherwise the full dim (full-extent blocks are always legal)."""
    if dim <= cap:
        return dim
    for cand in range(cap, align - 1, -1):
        if dim % cand == 0 and cand % align == 0:
            return cand
    return dim


def batch_pit_norm1d(x, cdf_data, bw, *, normal_backtransform=True,
                     tb=None, tf=None, s_blk=None):
    B, F = x.shape
    S, F2 = cdf_data.shape
    assert F == F2 and bw.shape == (1, F)

    auto_tf = tf is None
    auto_tb = tb is None
    if auto_tf:
        # Lane-dense (multiple of 128) feature tiles -> unmasked vector stores.
        tf = _pick_block(F, 512, 128)
    if auto_tb:
        # Keep every 2-D f32 intermediate at <= 8 vregs (tb*tf <= 8192): no spill traffic.
        cap_b = max(8, 8192 // tf)
        tb = _pick_block(B, cap_b, 8)

    # v7x megacore: the two TensorCores are sharded over the "parallel" grid axes, so make
    # sure there are at least two (batch x feature) tiles whenever the problem is splittable.
    if (auto_tf or auto_tb) and (B // tb) * (F // tf) < 2:
        if auto_tf and (tf // 2) % 128 == 0 and F % (tf // 2) == 0:
            tf //= 2
        elif auto_tb and (tb // 2) % 8 == 0 and B % (tb // 2) == 0:
            tb //= 2

    if s_blk is None:
        # Largest sample block whose double-buffered cdf_data stream stays within ~8 MiB
        # of VMEM (safe on every generation with the 32 MiB scoped limit below); fewer grid
        # steps and, typically, the n_s_blocks==1 direct-write path.
        budget = 8 * 1024 * 1024
        cap_s = max(8, budget // (2 * tf * cdf_data.dtype.itemsize))
        s_blk = _pick_block(S, min(S, cap_s), 8)

    assert B % tb == 0 and F % tf == 0 and S % s_blk == 0, "ragged shapes unsupported"

    n_s_blocks = S // s_blk
    kernel = functools.partial(
        _pit_kernel, s_total=S, s_blk=s_blk, n_s_blocks=n_s_blocks, chunk=_CHUNK,
        normal_backtransform=normal_backtransform)

    return pl.pallas_call(
        kernel,
        out_shape=jax.ShapeDtypeStruct((B, F), x.dtype),
        grid_spec=pltpu.PrefetchScalarGridSpec(
            num_scalar_prefetch=0,
            grid=(B // tb, F // tf, n_s_blocks),
            in_specs=[
                pl.BlockSpec((tb, tf), lambda b, f, s: (b, f)),      # x: resident over s
                pl.BlockSpec((s_blk, tf), lambda b, f, s: (s, f)),   # cdf_data: streamed
                pl.BlockSpec((1, tf), lambda b, f, s: (0, f)),       # bandwidths
            ],
            out_specs=pl.BlockSpec((tb, tf), lambda b, f, s: (b, f)),
            scratch_shapes=[
                pltpu.VMEM((tb, tf), jnp.float32),   # cross-sample-block accumulator
                pltpu.VMEM((tb, tf), jnp.float32),   # x / bw
                pltpu.VMEM((1, tf), jnp.float32),    # 1 / bw
            ]),
        compiler_params=pltpu.CompilerParams(
            dimension_semantics=("parallel", "parallel", "arbitrary"),
            vmem_limit_bytes=32 * 1024 * 1024),
    )(x, cdf_data, bw)


def _reference(x, cdf_data, bw, normal_backtransform=True):
    """Pure-JAX reference with the exact normal CDF / PPF (lax.erf / lax.erf_inv)."""
    z = (x[:, None, :].astype(jnp.float32)
         - cdf_data[None, :, :].astype(jnp.float32)) / bw[None, :, :].astype(jnp.float32)
    u = jnp.mean(0.5 * (1.0 + lax.erf(z * (1.0 / _SQRT2))), axis=1)
    if normal_backtransform:
        return _SQRT2 * lax.erf_inv(2.0 * u - 1.0)
    return u - 0.5


def _check(name, out, ref, atol, rtol):
    out = np.asarray(jax.block_until_ready(out))
    ref = np.asarray(ref)
    assert out.shape == ref.shape and out.dtype == ref.dtype
    ok = np.allclose(out, ref, atol=atol, rtol=rtol)
    assert ok, (name, float(np.abs(out - ref).max()))


if __name__ == "__main__":
    key = jax.random.PRNGKey(0)
    k_x, k_buf, k_bw = jax.random.split(key, 3)

    B = 8        # batch
    F = 256      # num_features
    S = 1024     # num_pit_samples (buffer full -> eval-mode forward)

    x = jax.random.normal(k_x, (B, F), dtype=jnp.float32)
    # Deterministic stand-in for the filled `cdf_data` buffer (register_buffer in __init__).
    cdf_data = jax.random.normal(k_buf, (S, F), dtype=jnp.float32)
    # trainable_bandwidths=True init: torch.rand(size=(1, num_features)); forward uses sigmoid.
    bw_param = jax.random.uniform(k_bw, (1, F), dtype=jnp.float32)
    bw = jax.nn.sigmoid(bw_param)

    # 1) Default tiling: auto megacore split -> grid (1, 2, 1), single-sample-block
    #    direct-write path, normal backtransform.  rtol accounts for Phi^-1 tail
    #    amplification (|d out/d u| = sqrt(2*pi)*exp(out^2/2)) of the ~1e-4 tanh-CDF error.
    out1 = batch_pit_norm1d(x, cdf_data, bw, normal_backtransform=True)
    ref1 = _reference(x, cdf_data, bw, normal_backtransform=True)
    _check("backtransform/default", out1, ref1, atol=5e-3, rtol=1.5e-2)

    # 2) Multi-sample-block accumulator path: grid (1, 2, 4).
    out2 = batch_pit_norm1d(x, cdf_data, bw, normal_backtransform=True,
                            tf=128, s_blk=256)
    _check("backtransform/4-sample-blocks", out2, ref1, atol=5e-3, rtol=1.5e-2)

    # 3) bf16 cdf_data stream (halves the only O(S*F) HBM stream) + uniform output (u - 0.5).
    cdf_bf16 = cdf_data.astype(jnp.bfloat16)
    out3 = batch_pit_norm1d(x, cdf_bf16, bw, normal_backtransform=False)
    ref3 = _reference(x, cdf_bf16, bw, normal_backtransform=False)
    _check("uniform/bf16-cdf", out3, ref3, atol=5e-3, rtol=5e-3)

    print("KERNEL_OK")
</pallas_src>

<mosaic_0001>
module attributes {stable_mosaic.version = 11 : i64} {
  func.func @_pit_kernel(%arg0: i32, %arg1: i32, %arg2: i32, %arg3: memref<8x128xf32, #tpu.memory_space<vmem>>, %arg4: memref<1024x128xf32, #tpu.memory_space<vmem>>, %arg5: memref<1x128xf32, #tpu.memory_space<vmem>>, %arg6: memref<8x128xf32, #tpu.memory_space<vmem>>, %arg7: memref<8x128xf32, #tpu.memory_space<vmem>>, %arg8: memref<8x128xf32, #tpu.memory_space<vmem>>, %arg9: memref<1x128xf32, #tpu.memory_space<vmem>>) attributes {dimension_semantics = [#tpu.dimension_semantics<parallel>, #tpu.dimension_semantics<parallel>, #tpu.dimension_semantics<arbitrary>], iteration_bounds = array<i64: 1, 2, 1>, scalar_prefetch = 0 : i64, scratch_operands = 3 : i64, tpu.core_type = #tpu.core_type<tc>, window_params = [{transform_indices = @transform_0, window_bounds = array<i64: 8, 128>}, {transform_indices = @transform_1, window_bounds = array<i64: 1024, 128>}, {transform_indices = @transform_2, window_bounds = array<i64: 1, 128>}, {transform_indices = @transform_3, window_bounds = array<i64: 8, 128>}]} {
    %c0_i32 = arith.constant 0 : i32
    %0 = arith.cmpi eq, %arg2, %c0_i32 : i32
    %1 = arith.extui %0 : i1 to i32
    %c0_i32_0 = arith.constant 0 : i32
    %2 = arith.cmpi ne, %1, %c0_i32_0 : i32
    scf.if %2 {
      %c0_36 = arith.constant 0 : index
      %c0_37 = arith.constant 0 : index
      %84 = vector.load %arg5[%c0_36, %c0_37] : memref<1x128xf32, #tpu.memory_space<vmem>>, vector<1x128xf32>
      %cst_38 = arith.constant 1.000000e+00 : f32
      %85 = vector.broadcast %cst_38 : f32 to vector<1x128xf32>
      %86 = arith.divf %85, %84 : vector<1x128xf32>
      %c0_39 = arith.constant 0 : index
      %c0_40 = arith.constant 0 : index
      %87 = vector.load %arg9[%c0_39, %c0_40] : memref<1x128xf32, #tpu.memory_space<vmem>>, vector<1x128xf32>
      tpu.vector_store %arg9[%c0_39, %c0_40], %86 {strides = array<i32>} : memref<1x128xf32, #tpu.memory_space<vmem>>, vector<1x128xf32>,
      %c0_41 = arith.constant 0 : index
      %c0_42 = arith.constant 0 : index
      %88 = vector.load %arg3[%c0_41, %c0_42] : memref<8x128xf32, #tpu.memory_space<vmem>>, vector<8x128xf32>
      %89 = vector.broadcast %86 : vector<1x128xf32> to vector<8x128xf32>
      %90 = arith.mulf %88, %89 : vector<8x128xf32>
      %c0_43 = arith.constant 0 : index
      %c0_44 = arith.constant 0 : index
      %91 = vector.load %arg8[%c0_43, %c0_44] : memref<8x128xf32, #tpu.memory_space<vmem>>, vector<8x128xf32>
      tpu.vector_store %arg8[%c0_43, %c0_44], %90 {strides = array<i32>} : memref<8x128xf32, #tpu.memory_space<vmem>>, vector<8x128xf32>,
    } else {
    }
    %c0 = arith.constant 0 : index
    %c0_1 = arith.constant 0 : index
    %3 = vector.load %arg8[%c0, %c0_1] : memref<8x128xf32, #tpu.memory_space<vmem>>, vector<8x128xf32>
    %c0_2 = arith.constant 0 : index
    %c0_3 = arith.constant 0 : index
    %4 = vector.load %arg9[%c0_2, %c0_3] : memref<1x128xf32, #tpu.memory_space<vmem>>, vector<1x128xf32>
    %cst = arith.constant 0.000000e+00 : f32
    %5 = vector.broadcast %cst : f32 to vector<8x128xf32>
    %c0_i32_4 = arith.constant 0 : i32
    %c64_i32 = arith.constant 64 : i32
    %6 = arith.addi %c0_i32_4, %c64_i32 : i32
    %c1_i32 = arith.constant 1 : i32
    %7 = scf.for %arg10 = %c0_i32_4 to %6 step %c1_i32 iter_args(%arg11 = %5) -> (vector<8x128xf32>)  : i32 {
      %c16_i32 = arith.constant 16 : i32
      %84 = arith.muli %arg10, %c16_i32 : i32
      %85 = tpu.assume_multiple %84, 16 : i32
      %86 = arith.index_cast %85 : i32 to index
      %c0_36 = arith.constant 0 : index
      %87 = vector.load %arg4[%86, %c0_36] : memref<1024x128xf32, #tpu.memory_space<vmem>>, vector<16x128xf32>
      %88 = vector.broadcast %4 : vector<1x128xf32> to vector<16x128xf32>
      %89 = arith.mulf %87, %88 : vector<16x128xf32>
      %90 = vector.extract_strided_slice %89 {offsets = [0, 0], sizes = [1, 128], strides = [1, 1]} : vector<16x128xf32> to vector<1x128xf32>
      %91 = vector.broadcast %90 : vector<1x128xf32> to vector<8x128xf32>
      %92 = arith.subf %3, %91 : vector<8x128xf32>
      %93 = arith.mulf %92, %92 : vector<8x128xf32>
      %cst_37 = arith.constant 0.0356774069 : f32
      %94 = vector.broadcast %cst_37 : f32 to vector<8x128xf32>
      %95 = arith.mulf %94, %93 : vector<8x128xf32>
      %cst_38 = arith.constant 0.797884583 : f32
      %96 = vector.broadcast %cst_38 : f32 to vector<8x128xf32>
      %97 = arith.addf %96, %95 : vector<8x128xf32>
      %98 = arith.mulf %92, %97 : vector<8x128xf32>
      %99 = math.tanh %98 : vector<8x128xf32>
      %100 = arith.addf %arg11, %99 : vector<8x128xf32>
      %101 = vector.extract_strided_slice %89 {offsets = [1, 0], sizes = [1, 128], strides = [1, 1]} : vector<16x128xf32> to vector<1x128xf32>
      %102 = vector.broadcast %101 : vector<1x128xf32> to vector<8x128xf32>
      %103 = arith.subf %3, %102 : vector<8x128xf32>
      %104 = arith.mulf %103, %103 : vector<8x128xf32>
      %cst_39 = arith.constant 0.0356774069 : f32
      %105 = vector.broadcast %cst_39 : f32 to vector<8x128xf32>
      %106 = arith.mulf %105, %104 : vector<8x128xf32>
      %cst_40 = arith.constant 0.797884583 : f32
      %107 = vector.broadcast %cst_40 : f32 to vector<8x128xf32>
      %108 = arith.addf %107, %106 : vector<8x128xf32>
      %109 = arith.mulf %103, %108 : vector<8x128xf32>
      %110 = math.tanh %109 : vector<8x128xf32>
      %111 = arith.addf %100, %110 : vector<8x128xf32>
      %112 = vector.extract_strided_slice %89 {offsets = [2, 0], sizes = [1, 128], strides = [1, 1]} : vector<16x128xf32> to vector<1x128xf32>
      %113 = vector.broadcast %112 : vector<1x128xf32> to vector<8x128xf32>
      %114 = arith.subf %3, %113 : vector<8x128xf32>
      %115 = arith.mulf %114, %114 : vector<8x128xf32>
      %cst_41 = arith.constant 0.0356774069 : f32
      %116 = vector.broadcast %cst_41 : f32 to vector<8x128xf32>
      %117 = arith.mulf %116, %115 : vector<8x128xf32>
      %cst_42 = arith.constant 0.797884583 : f32
      %118 = vector.broadcast %cst_42 : f32 to vector<8x128xf32>
      %119 = arith.addf %118, %117 : vector<8x128xf32>
      %120 = arith.mulf %114, %119 : vector<8x128xf32>
      %121 = math.tanh %120 : vector<8x128xf32>
      %122 = arith.addf %111, %121 : vector<8x128xf32>
      %123 = vector.extract_strided_slice %89 {offsets = [3, 0], sizes = [1, 128], strides = [1, 1]} : vector<16x128xf32> to vector<1x128xf32>
      %124 = vector.broadcast %123 : vector<1x128xf32> to vector<8x128xf32>
      %125 = arith.subf %3, %124 : vector<8x128xf32>
      %126 = arith.mulf %125, %125 : vector<8x128xf32>
      %cst_43 = arith.constant 0.0356774069 : f32
      %127 = vector.broadcast %cst_43 : f32 to vector<8x128xf32>
      %128 = arith.mulf %127, %126 : vector<8x128xf32>
      %cst_44 = arith.constant 0.797884583 : f32
      %129 = vector.broadcast %cst_44 : f32 to vector<8x128xf32>
      %130 = arith.addf %129, %128 : vector<8x128xf32>
      %131 = arith.mulf %125, %130 : vector<8x128xf32>
      %132 = math.tanh %131 : vector<8x128xf32>
      %133 = arith.addf %122, %132 : vector<8x128xf32>
      %134 = vector.extract_strided_slice %89 {offsets = [4, 0], sizes = [1, 128], strides = [1, 1]} : vector<16x128xf32> to vector<1x128xf32>
      %135 = vector.broadcast %134 : vector<1x128xf32> to vector<8x128xf32>
      %136 = arith.subf %3, %135 : vector<8x128xf32>
      %137 = arith.mulf %136, %136 : vector<8x128xf32>
      %cst_45 = arith.constant 0.0356774069 : f32
      %138 = vector.broadcast %cst_45 : f32 to vector<8x128xf32>
      %139 = arith.mulf %138, %137 : vector<8x128xf32>
      %cst_46 = arith.constant 0.797884583 : f32
      %140 = vector.broadcast %cst_46 : f32 to vector<8x128xf32>
      %141 = arith.addf %140, %139 : vector<8x128xf32>
      %142 = arith.mulf %136, %141 : vector<8x128xf32>
      %143 = math.tanh %142 : vector<8x128xf32>
      %144 = arith.addf %133, %143 : vector<8x128xf32>
      %145 = vector.extract_strided_slice %89 {offsets = [5, 0], sizes = [1, 128], strides = [1, 1]} : vector<16x128xf32> to vector<1x128xf32>
      %146 = vector.broadcast %145 : vector<1x128xf32> to vector<8x128xf32>
      %147 = arith.subf %3, %146 : vector<8x128xf32>
      %148 = arith.mulf %147, %147 : vector<8x128xf32>
      %cst_47 = arith.constant 0.0356774069 : f32
      %149 = vector.broadcast %cst_47 : f32 to vector<8x128xf32>
      %150 = arith.mulf %149, %148 : vector<8x128xf32>
      %cst_48 = arith.constant 0.797884583 : f32
      %151 = vector.broadcast %cst_48 : f32 to vector<8x128xf32>
      %152 = arith.addf %151, %150 : vector<8x128xf32>
      %153 = arith.mulf %147, %152 : vector<8x128xf32>
      %154 = math.tanh %153 : vector<8x128xf32>
      %155 = arith.addf %144, %154 : vector<8x128xf32>
      %156 = vector.extract_strided_slice %89 {offsets = [6, 0], sizes = [1, 128], strides = [1, 1]} : vector<16x128xf32> to vector<1x128xf32>
      %157 = vector.broadcast %156 : vector<1x128xf32> to vector<8x128xf32>
      %158 = arith.subf %3, %157 : vector<8x128xf32>
      %159 = arith.mulf %158, %158 : vector<8x128xf32>
      %cst_49 = arith.constant 0.0356774069 : f32
      %160 = vector.broadcast %cst_49 : f32 to vector<8x128xf32>
      %161 = arith.mulf %160, %159 : vector<8x128xf32>
      %cst_50 = arith.constant 0.797884583 : f32
      %162 = vector.broadcast %cst_50 : f32 to vector<8x128xf32>
      %163 = arith.addf %162, %161 : vector<8x128xf32>
      %164 = arith.mulf %158, %163 : vector<8x128xf32>
      %165 = math.tanh %164 : vector<8x128xf32>
      %166 = arith.addf %155, %165 : vector<8x128xf32>
      %167 = vector.extract_strided_slice %89 {offsets = [7, 0], sizes = [1, 128], strides = [1, 1]} : vector<16x128xf32> to vector<1x128xf32>
      %168 = vector.broadcast %167 : vector<1x128xf32> to vector<8x128xf32>
      %169 = arith.subf %3, %168 : vector<8x128xf32>
      %170 = arith.mulf %169, %169 : vector<8x128xf32>
      %cst_51 = arith.constant 0.0356774069 : f32
      %171 = vector.broadcast %cst_51 : f32 to vector<8x128xf32>
      %172 = arith.mulf %171, %170 : vector<8x128xf32>
      %cst_52 = arith.constant 0.797884583 : f32
      %173 = vector.broadcast %cst_52 : f32 to vector<8x128xf32>
      %174 = arith.addf %173, %172 : vector<8x128xf32>
      %175 = arith.mulf %169, %174 : vector<8x128xf32>
      %176 = math.tanh %175 : vector<8x128xf32>
      %177 = arith.addf %166, %176 : vector<8x128xf32>
      %178 = vector.extract_strided_slice %89 {offsets = [8, 0], sizes = [1, 128], strides = [1, 1]} : vector<16x128xf32> to vector<1x128xf32>
      %179 = vector.broadcast %178 : vector<1x128xf32> to vector<8x128xf32>
      %180 = arith.subf %3, %179 : vector<8x128xf32>
      %181 = arith.mulf %180, %180 : vector<8x128xf32>
      %cst_53 = arith.constant 0.0356774069 : f32
      %182 = vector.broadcast %cst_53 : f32 to vector<8x128xf32>
      %183 = arith.mulf %182, %181 : vector<8x128xf32>
      %cst_54 = arith.constant 0.797884583 : f32
      %184 = vector.broadcast %cst_54 : f32 to vector<8x128xf32>
      %185 = arith.addf %184, %183 : vector<8x128xf32>
      %186 = arith.mulf %180, %185 : vector<8x128xf32>
      %187 = math.tanh %186 : vector<8x128xf32>
      %188 = arith.addf %177, %187 : vector<8x128xf32>
      %189 = vector.extract_strided_slice %89 {offsets = [9, 0], sizes = [1, 128], strides = [1, 1]} : vector<16x128xf32> to vector<1x128xf32>
      %190 = vector.broadcast %189 : vector<1x128xf32> to vector<8x128xf32>
      %191 = arith.subf %3, %190 : vector<8x128xf32>
      %192 = arith.mulf %191, %191 : vector<8x128xf32>
      %cst_55 = arith.constant 0.0356774069 : f32
      %193 = vector.broadcast %cst_55 : f32 to vector<8x128xf32>
      %194 = arith.mulf %193, %192 : vector<8x128xf32>
      %cst_56 = arith.constant 0.797884583 : f32
      %195 = vector.broadcast %cst_56 : f32 to vector<8x128xf32>
      %196 = arith.addf %195, %194 : vector<8x128xf32>
      %197 = arith.mulf %191, %196 : vector<8x128xf32>
      %198 = math.tanh %197 : vector<8x128xf32>
      %199 = arith.addf %188, %198 : vector<8x128xf32>
      %200 = vector.extract_strided_slice %89 {offsets = [10, 0], sizes = [1, 128], strides = [1, 1]} : vector<16x128xf32> to vector<1x128xf32>
      %201 = vector.broadcast %200 : vector<1x128xf32> to vector<8x128xf32>
      %202 = arith.subf %3, %201 : vector<8x128xf32>
      %203 = arith.mulf %202, %202 : vector<8x128xf32>
      %cst_57 = arith.constant 0.0356774069 : f32
      %204 = vector.broadcast %cst_57 : f32 to vector<8x128xf32>
      %205 = arith.mulf %204, %203 : vector<8x128xf32>
      %cst_58 = arith.constant 0.797884583 : f32
      %206 = vector.broadcast %cst_58 : f32 to vector<8x128xf32>
      %207 = arith.addf %206, %205 : vector<8x128xf32>
      %208 = arith.mulf %202, %207 : vector<8x128xf32>
      %209 = math.tanh %208 : vector<8x128xf32>
      %210 = arith.addf %199, %209 : vector<8x128xf32>
      %211 = vector.extract_strided_slice %89 {offsets = [11, 0], sizes = [1, 128], strides = [1, 1]} : vector<16x128xf32> to vector<1x128xf32>
      %212 = vector.broadcast %211 : vector<1x128xf32> to vector<8x128xf32>
      %213 = arith.subf %3, %212 : vector<8x128xf32>
      %214 = arith.mulf %213, %213 : vector<8x128xf32>
      %cst_59 = arith.constant 0.0356774069 : f32
      %215 = vector.broadcast %cst_59 : f32 to vector<8x128xf32>
      %216 = arith.mulf %215, %214 : vector<8x128xf32>
      %cst_60 = arith.constant 0.797884583 : f32
      %217 = vector.broadcast %cst_60 : f32 to vector<8x128xf32>
      %218 = arith.addf %217, %216 : vector<8x128xf32>
      %219 = arith.mulf %213, %218 : vector<8x128xf32>
      %220 = math.tanh %219 : vector<8x128xf32>
      %221 = arith.addf %210, %220 : vector<8x128xf32>
      %222 = vector.extract_strided_slice %89 {offsets = [12, 0], sizes = [1, 128], strides = [1, 1]} : vector<16x128xf32> to vector<1x128xf32>
      %223 = vector.broadcast %222 : vector<1x128xf32> to vector<8x128xf32>
      %224 = arith.subf %3, %223 : vector<8x128xf32>
      %225 = arith.mulf %224, %224 : vector<8x128xf32>
      %cst_61 = arith.constant 0.0356774069 : f32
      %226 = vector.broadcast %cst_61 : f32 to vector<8x128xf32>
      %227 = arith.mulf %226, %225 : vector<8x128xf32>
      %cst_62 = arith.constant 0.797884583 : f32
      %228 = vector.broadcast %cst_62 : f32 to vector<8x128xf32>
      %229 = arith.addf %228, %227 : vector<8x128xf32>
      %230 = arith.mulf %224, %229 : vector<8x128xf32>
      %231 = math.tanh %230 : vector<8x128xf32>
      %232 = arith.addf %221, %231 : vector<8x128xf32>
      %233 = vector.extract_strided_slice %89 {offsets = [13, 0], sizes = [1, 128], strides = [1, 1]} : vector<16x128xf32> to vector<1x128xf32>
      %234 = vector.broadcast %233 : vector<1x128xf32> to vector<8x128xf32>
      %235 = arith.subf %3, %234 : vector<8x128xf32>
      %236 = arith.mulf %235, %235 : vector<8x128xf32>
      %cst_63 = arith.constant 0.0356774069 : f32
      %237 = vector.broadcast %cst_63 : f32 to vector<8x128xf32>
      %238 = arith.mulf %237, %236 : vector<8x128xf32>
      %cst_64 = arith.constant 0.797884583 : f32
      %239 = vector.broadcast %cst_64 : f32 to vector<8x128xf32>
      %240 = arith.addf %239, %238 : vector<8x128xf32>
      %241 = arith.mulf %235, %240 : vector<8x128xf32>
      %242 = math.tanh %241 : vector<8x128xf32>
      %243 = arith.addf %232, %242 : vector<8x128xf32>
      %244 = vector.extract_strided_slice %89 {offsets = [14, 0], sizes = [1, 128], strides = [1, 1]} : vector<16x128xf32> to vector<1x128xf32>
      %245 = vector.broadcast %244 : vector<1x128xf32> to vector<8x128xf32>
      %246 = arith.subf %3, %245 : vector<8x128xf32>
      %247 = arith.mulf %246, %246 : vector<8x128xf32>
      %cst_65 = arith.constant 0.0356774069 : f32
      %248 = vector.broadcast %cst_65 : f32 to vector<8x128xf32>
      %249 = arith.mulf %248, %247 : vector<8x128xf32>
      %cst_66 = arith.constant 0.797884583 : f32
      %250 = vector.broadcast %cst_66 : f32 to vector<8x128xf32>
      %251 = arith.addf %250, %249 : vector<8x128xf32>
      %252 = arith.mulf %246, %251 : vector<8x128xf32>
      %253 = math.tanh %252 : vector<8x128xf32>
      %254 = arith.addf %243, %253 : vector<8x128xf32>
      %255 = vector.extract_strided_slice %89 {offsets = [15, 0], sizes = [1, 128], strides = [1, 1]} : vector<16x128xf32> to vector<1x128xf32>
      %256 = vector.broadcast %255 : vector<1x128xf32> to vector<8x128xf32>
      %257 = arith.subf %3, %256 : vector<8x128xf32>
      %258 = arith.mulf %257, %257 : vector<8x128xf32>
      %cst_67 = arith.constant 0.0356774069 : f32
      %259 = vector.broadcast %cst_67 : f32 to vector<8x128xf32>
      %260 = arith.mulf %259, %258 : vector<8x128xf32>
      %cst_68 = arith.constant 0.797884583 : f32
      %261 = vector.broadcast %cst_68 : f32 to vector<8x128xf32>
      %262 = arith.addf %261, %260 : vector<8x128xf32>
      %263 = arith.mulf %257, %262 : vector<8x128xf32>
      %264 = math.tanh %263 : vector<8x128xf32>
      %265 = arith.addf %254, %264 : vector<8x128xf32>
      scf.yield %265 : vector<8x128xf32>
    }
    %c64_i32_5 = arith.constant 64 : i32
    %cst_6 = arith.constant 9.765625E-4 : f32
    %8 = vector.broadcast %cst_6 : f32 to vector<8x128xf32>
    %9 = arith.mulf %7, %8 : vector<8x128xf32>
    %cst_7 = arith.constant -0.999997973 : f32
    %cst_8 = arith.constant 0.999997973 : f32
    %10 = vector.broadcast %cst_7 : f32 to vector<8x128xf32>
    %11 = arith.maximumf %10, %9 : vector<8x128xf32>
    %12 = vector.broadcast %cst_8 : f32 to vector<8x128xf32>
    %13 = arith.minimumf %12, %11 : vector<8x128xf32>
    %cst_9 = arith.constant 1.000000e+00 : f32
    %14 = vector.broadcast %cst_9 : f32 to vector<8x128xf32>
    %15 = arith.subf %14, %13 : vector<8x128xf32>
    %cst_10 = arith.constant 1.000000e+00 : f32
    %16 = vector.broadcast %cst_10 : f32 to vector<8x128xf32>
    %17 = arith.addf %16, %13 : vector<8x128xf32>
    %18 = arith.mulf %15, %17 : vector<8x128xf32>
    %19 = math.log %18 : vector<8x128xf32>
    %cst_11 = arith.constant 0.000000e+00 : f32
    %20 = vector.broadcast %cst_11 : f32 to vector<8x128xf32>
    %21 = arith.subf %20, %19 : vector<8x128xf32>
    %cst_12 = arith.constant 2.500000e+00 : f32
    %22 = vector.broadcast %cst_12 : f32 to vector<8x128xf32>
    %23 = arith.subf %21, %22 : vector<8x128xf32>
    %cst_13 = arith.constant 2.81022636E-8 : f32
    %24 = vector.broadcast %cst_13 : f32 to vector<8x128xf32>
    %25 = arith.mulf %24, %23 : vector<8x128xf32>
    %cst_14 = arith.constant 3.43273939E-7 : f32
    %26 = vector.broadcast %cst_14 : f32 to vector<8x128xf32>
    %27 = arith.addf %26, %25 : vector<8x128xf32>
    %28 = arith.mulf %27, %23 : vector<8x128xf32>
    %cst_15 = arith.constant -3.5233877E-6 : f32
    %29 = vector.broadcast %cst_15 : f32 to vector<8x128xf32>
    %30 = arith.addf %29, %28 : vector<8x128xf32>
    %31 = arith.mulf %30, %23 : vector<8x128xf32>
    %cst_16 = arith.constant -4.39150654E-6 : f32
    %32 = vector.broadcast %cst_16 : f32 to vector<8x128xf32>
    %33 = arith.addf %32, %31 : vector<8x128xf32>
    %34 = arith.mulf %33, %23 : vector<8x128xf32>
    %cst_17 = arith.constant 2.1858087E-4 : f32
    %35 = vector.broadcast %cst_17 : f32 to vector<8x128xf32>
    %36 = arith.addf %35, %34 : vector<8x128xf32>
    %37 = arith.mulf %36, %23 : vector<8x128xf32>
    %cst_18 = arith.constant -0.00125372503 : f32
    %38 = vector.broadcast %cst_18 : f32 to vector<8x128xf32>
    %39 = arith.addf %38, %37 : vector<8x128xf32>
    %40 = arith.mulf %39, %23 : vector<8x128xf32>
    %cst_19 = arith.constant -0.00417768164 : f32
    %41 = vector.broadcast %cst_19 : f32 to vector<8x128xf32>
    %42 = arith.addf %41, %40 : vector<8x128xf32>
    %43 = arith.mulf %42, %23 : vector<8x128xf32>
    %cst_20 = arith.constant 0.246640727 : f32
    %44 = vector.broadcast %cst_20 : f32 to vector<8x128xf32>
    %45 = arith.addf %44, %43 : vector<8x128xf32>
    %46 = arith.mulf %45, %23 : vector<8x128xf32>
    %cst_21 = arith.constant 1.50140941 : f32
    %47 = vector.broadcast %cst_21 : f32 to vector<8x128xf32>
    %48 = arith.addf %47, %46 : vector<8x128xf32>
    %49 = math.sqrt %21 : vector<8x128xf32>
    %cst_22 = arith.constant 3.000000e+00 : f32
    %50 = vector.broadcast %cst_22 : f32 to vector<8x128xf32>
    %51 = arith.subf %49, %50 : vector<8x128xf32>
    %cst_23 = arith.constant -2.00214257E-4 : f32
    %52 = vector.broadcast %cst_23 : f32 to vector<8x128xf32>
    %53 = arith.mulf %52, %51 : vector<8x128xf32>
    %cst_24 = arith.constant 1.00950558E-4 : f32
    %54 = vector.broadcast %cst_24 : f32 to vector<8x128xf32>
    %55 = arith.addf %54, %53 : vector<8x128xf32>
    %56 = arith.mulf %55, %51 : vector<8x128xf32>
    %cst_25 = arith.constant 0.00134934322 : f32
    %57 = vector.broadcast %cst_25 : f32 to vector<8x128xf32>
    %58 = arith.addf %57, %56 : vector<8x128xf32>
    %59 = arith.mulf %58, %51 : vector<8x128xf32>
    %cst_26 = arith.constant -0.00367342844 : f32
    %60 = vector.broadcast %cst_26 : f32 to vector<8x128xf32>
    %61 = arith.addf %60, %59 : vector<8x128xf32>
    %62 = arith.mulf %61, %51 : vector<8x128xf32>
    %cst_27 = arith.constant 0.00573950773 : f32
    %63 = vector.broadcast %cst_27 : f32 to vector<8x128xf32>
    %64 = arith.addf %63, %62 : vector<8x128xf32>
    %65 = arith.mulf %64, %51 : vector<8x128xf32>
    %cst_28 = arith.constant -0.0076224613 : f32
    %66 = vector.broadcast %cst_28 : f32 to vector<8x128xf32>
    %67 = arith.addf %66, %65 : vector<8x128xf32>
    %68 = arith.mulf %67, %51 : vector<8x128xf32>
    %cst_29 = arith.constant 0.00943887047 : f32
    %69 = vector.broadcast %cst_29 : f32 to vector<8x128xf32>
    %70 = arith.addf %69, %68 : vector<8x128xf32>
    %71 = arith.mulf %70, %51 : vector<8x128xf32>
    %cst_30 = arith.constant 1.00167406 : f32
    %72 = vector.broadcast %cst_30 : f32 to vector<8x128xf32>
    %73 = arith.addf %72, %71 : vector<8x128xf32>
    %74 = arith.mulf %73, %51 : vector<8x128xf32>
    %cst_31 = arith.constant 2.83297682 : f32
    %75 = vector.broadcast %cst_31 : f32 to vector<8x128xf32>
    %76 = arith.addf %75, %74 : vector<8x128xf32>
    %cst_32 = arith.constant 5.000000e+00 : f32
    %77 = vector.broadcast %cst_32 : f32 to vector<8x128xf32>
    %78 = arith.cmpf olt, %21, %77 : vector<8x128xf32>
    %79 = arith.select %78, %48, %76 : vector<8x128xi1>, vector<8x128xf32>
    %80 = arith.mulf %79, %13 : vector<8x128xf32>
    %cst_33 = arith.constant 1.41421354 : f32
    %81 = vector.broadcast %cst_33 : f32 to vector<8x128xf32>
    %82 = arith.mulf %81, %80 : vector<8x128xf32>
    %c0_34 = arith.constant 0 : index
    %c0_35 = arith.constant 0 : index
    %83 = vector.load %arg6[%c0_34, %c0_35] : memref<8x128xf32, #tpu.memory_space<vmem>>, vector<8x128xf32>
    tpu.vector_store %arg6[%c0_34, %c0_35], %82 {strides = array<i32>} : memref<8x128xf32, #tpu.memory_space<vmem>>, vector<8x128xf32>,
    return
  }
  func.func @transform_0(%arg0: i32, %arg1: i32, %arg2: i32) -> (i32, i32) {
    %c0_i32 = arith.constant 0 : i32
    return %arg0, %arg1 : i32, i32
  }
  func.func @transform_1(%arg0: i32, %arg1: i32, %arg2: i32) -> (i32, i32) {
    %c0_i32 = arith.constant 0 : i32
    return %arg2, %arg1 : i32, i32
  }
  func.func @transform_2(%arg0: i32, %arg1: i32, %arg2: i32) -> (i32, i32) {
    %c0_i32 = arith.constant 0 : i32
    %c0_i32_0 = arith.constant 0 : i32
    return %c0_i32, %arg1 : i32, i32
  }
  func.func @transform_3(%arg0: i32, %arg1: i32, %arg2: i32) -> (i32, i32) {
    %c0_i32 = arith.constant 0 : i32
    return %arg0, %arg1 : i32, i32
  }
}

</mosaic_0001>

<llo_original>
// kernel: tpu_custom_call.1
$region0: #{tpu_custom_call.1}
  #allocation0 [shape = 'u32[]', space=smem, size = 0x4, offset = 0x4, fixed_abs, tag = 'smem constant byte address 0x4 - core index']
  #allocation1 [shape = 'u32[144,128]{1,0:T(1,128)}', space=vmem, size = 0x12000, scoped, tag = 'internal scratch']
  #allocation2 [shape = 'f32[8,128]{1,0:T(8,128)}', space=vmem, size = 0x1000, scoped, tag = 'scratch operand']
  #allocation3 [shape = 'f32[8,128]{1,0:T(8,128)}', space=vmem, size = 0x1000, scoped, tag = 'scratch operand']
  #allocation4 [shape = 'f32[1,128]{1,0:T(1,128)}', space=vmem, size = 0x200, scoped, tag = 'scratch operand']
  %s0 = inlined_call_operand.hbm [shape: f32[8,256], index: 0, kind: input, shape index: {}]
  %s1 = inlined_call_operand.hbm [shape: f32[1024,256], index: 1, kind: input, shape index: {}]
  %s2 = inlined_call_operand.vmem [shape: f32[1,256], index: 2, kind: input, shape index: {}]
  %s3 = inlined_call_operand.hbm [shape: f32[8,256], index: 3, kind: output, shape index: {}]
  %s4 = sld [smem:[#allocation0]]
  $region64: #{tpu_custom_call.1} parent=0
    _
  %s6 = ssub.s32 1, %s4
  %s7 = scalar_select 0, %s6, %s4
  $region1: #{tpu_custom_call.1} parent=0
    #allocation5 [shape = 'u8[8192]{0}', space=vmem, size = 0x2000, scoped, tag = 'input window, operand 0']
    #allocation6 [shape = 's32[2]{0}', space=sflag, size = 0x8, scoped, tag = 'scoped memory for tpu_custom_call.1']
    #allocation7 [shape = 's32[2]{0}', space=sflag, size = 0x8, scoped, tag = 'scoped memory for tpu_custom_call.1']
    #allocation8 [shape = 'u8[1048576]{0}', space=vmem, size = 0x100000, scoped, tag = 'input window, operand 1']
    #allocation9 [shape = 's32[2]{0}', space=sflag, size = 0x8, scoped, tag = 'scoped memory for tpu_custom_call.1']
    #allocation10 [shape = 'u8[8192]{0}', space=vmem, size = 0x2000, scoped, tag = 'output window, operand 0']
    %8 = vsyncpa [#allocation6], 0
    %s9 = scalar_lea.sflag [#allocation6], 1
    %10 = vsyncpa %s9, 0
    %11 = vsyncpa [#allocation9], 0
    %s12 = scalar_lea.sflag [#allocation9], 1
    %13 = vsyncpa %s12, 0
    %14 = vsyncpa [#allocation7], 0
    %s15 = scalar_lea.sflag [#allocation7], 1
    %16 = vsyncpa %s15, 0
    loop: start=0, step=1, limit=4
    $region2: #{tpu_custom_call.1} parent=1 // loop_pre_header
      _
    $region3: #{tpu_custom_call.1} parent=1 // loop_header
      %s18 = sphi 0, %s22
      %p19 = scmp.ge.s32.totalorder %s18, 4
      %s25 = sphi 0, %s44
      %s26 = sphi 0, %s40
      %s27 = sphi 0, %s36
      %s28 = sphi 0, %s25
      %s29 = sphi 0, %s26
      %s30 = sphi 0, %s27
      %s31 = sphi 0, %s28
      %s32 = sphi 0, %s29
      %s33 = sphi 0, %s30
      %s49 = sphi 0, %s51
      %s52 = sphi 0, %s49
      %s53 = sphi 0, %s52
      %s69 = sphi 0, %s53
      %s77 = sphi 0, %s79
      %s80 = sphi 0, %s77
      %s81 = sphi 0, %s80
      %s97 = sphi 0, %s81
      %s103 = sphi 0, %s105
      %s106 = sphi 0, %s103
      %s107 = sphi 0, %s106
      %s123 = sphi 0, %s107
      %s131 = sphi 0, %s133
      %s134 = sphi 0, %s131
      %s135 = sphi 0, %s134
      %s151 = sphi 0, %s135
    $region4: #{tpu_custom_call.1} parent=1 // loop_header_branch
      %21 = sbr.rel (%p19) target = $region8
    $region5: #{tpu_custom_call.1} parent=1 // loop_body
      %s23 = ssub.s32 %s18, 1
      %s24 = ssub.s32 %s18, 2
      %s34 = sadd.s32 1, %s27
      %p35 = scmp.ge.s32.totalorder %s34, 1
      %s36 = scalar_select %p35, 0, %s34
      %s37 = sadd.s32 1, %s26
      %s38 = scalar_select %p35, %s37, %s26
      %p39 = scmp.ge.s32.totalorder %s38, 2
      %s40 = scalar_select %p39, 0, %s38
      %s41 = sadd.s32 1, %s25
      %s42 = scalar_select %p39, %s41, %s25
      %p43 = scmp.ge.s32.totalorder %s42, 1
      %s44 = scalar_select %p43, 0, %s42
      %s45 = ssub.s32 %s25, %s44
      %s46 = ssub.s32 %s26, %s40
      %s47 = sor.u32 %s45, %s46
      %p48 = scmp.eq.s32.totalorder %s47, 0
      %s50 = sadd.s32 %s49, 1
      %s51 = scalar_select %p48, %s49, %s50
      %p54 = pneg %p48
      %p55 = scmp.eq.s32.totalorder %s18, 1
      %p56 = por %p54, %p55
      %p57 = scmp.ne.s32.totalorder %s49, %s52
      %p58 = scmp.eq.s32.totalorder %s18, 0
      %p59 = por %p57, %p58
      %p60 = scmp.ne.s32.totalorder %s49, %s52
      %p61 = scmp.eq.s32.totalorder %s23, 1
      %p62 = por %p60, %p61
      %p63 = scmp.ne.s32.totalorder %s52, %s53
      %p64 = scmp.eq.s32.totalorder %s23, 0
      %p65 = por %p63, %p64
      %p66 = scmp.ne.s32.totalorder %s52, %s53
      %p67 = scmp.eq.s32.totalorder %s24, 1
      %p68 = por %p66, %p67
      %p70 = scmp.ne.s32.totalorder %s53, %s69
      %p71 = scmp.eq.s32.totalorder %s24, 0
      %p72 = por %p70, %p71
      %s73 = ssub.s32 %s27, %s36
      %s74 = ssub.s32 %s26, %s40
      %s75 = sor.u32 %s73, %s74
      %p76 = scmp.eq.s32.totalorder %s75, 0
      %s78 = sadd.s32 %s77, 1
      %s79 = scalar_select %p76, %s77, %s78
      %p82 = pneg %p76
      %p83 = scmp.eq.s32.totalorder %s18, 1
      %p84 = por %p82, %p83
      %p85 = scmp.ne.s32.totalorder %s77, %s80
      %p86 = scmp.eq.s32.totalorder %s18, 0
      %p87 = por %p85, %p86
      %p88 = scmp.ne.s32.totalorder %s77, %s80
      %p89 = scmp.eq.s32.totalorder %s23, 1
      %p90 = por %p88, %p89
      %p91 = scmp.ne.s32.totalorder %s80, %s81
      %p92 = scmp.eq.s32.totalorder %s23, 0
      %p93 = por %p91, %p92
      %p94 = scmp.ne.s32.totalorder %s80, %s81
      %p95 = scmp.eq.s32.totalorder %s24, 1
      %p96 = por %p94, %p95
      %p98 = scmp.ne.s32.totalorder %s81, %s97
      %p99 = scmp.eq.s32.totalorder %s24, 0
      %p100 = por %p98, %p99
      %s101 = ssub.s32 %s26, %s40
      %p102 = scmp.eq.s32.totalorder %s101, 0
      %s104 = sadd.s32 %s103, 1
      %s105 = scalar_select %p102, %s103, %s104
      %p108 = pneg %p102
      %p109 = scmp.eq.s32.totalorder %s18, 1
      %p110 = por %p108, %p109
      %p111 = scmp.ne.s32.totalorder %s103, %s106
      %p112 = scmp.eq.s32.totalorder %s18, 0
      %p113 = por %p111, %p112
      %p114 = scmp.ne.s32.totalorder %s103, %s106
      %p115 = scmp.eq.s32.totalorder %s23, 1
      %p116 = por %p114, %p115
      %p117 = scmp.ne.s32.totalorder %s106, %s107
      %p118 = scmp.eq.s32.totalorder %s23, 0
      %p119 = por %p117, %p118
      %p120 = scmp.ne.s32.totalorder %s106, %s107
      %p121 = scmp.eq.s32.totalorder %s24, 1
      %p122 = por %p120, %p121
      %p124 = scmp.ne.s32.totalorder %s107, %s123
      %p125 = scmp.eq.s32.totalorder %s24, 0
      %p126 = por %p124, %p125
      %s127 = ssub.s32 %s25, %s44
      %s128 = ssub.s32 %s26, %s40
      %s129 = sor.u32 %s127, %s128
      %p130 = scmp.eq.s32.totalorder %s129, 0
      %s132 = sadd.s32 %s131, 1
      %s133 = scalar_select %p130, %s131, %s132
      %p136 = pneg %p130
      %p137 = scmp.eq.s32.totalorder %s18, 1
      %p138 = por %p136, %p137
      %p139 = scmp.ne.s32.totalorder %s131, %s134
      %p140 = scmp.eq.s32.totalorder %s18, 0
      %p141 = por %p139, %p140
      %p142 = scmp.ne.s32.totalorder %s131, %s134
      %p143 = scmp.eq.s32.totalorder %s23, 1
      %p144 = por %p142, %p143
      %p145 = scmp.ne.s32.totalorder %s134, %s135
      %p146 = scmp.eq.s32.totalorder %s23, 0
      %p147 = por %p145, %p146
      %p148 = scmp.ne.s32.totalorder %s134, %s135
      %p149 = scmp.eq.s32.totalorder %s24, 1
      %p150 = por %p148, %p149
      %p152 = scmp.ne.s32.totalorder %s135, %s151
      %p153 = scmp.eq.s32.totalorder %s24, 0
      %p154 = por %p152, %p153
      %p155 = scmp.le.s32.totalorder 1, %s18
      %p156 = scmp.lt.s32.totalorder %s18, 3
      %p157 = pnand %p155, %p156
      %p158 = pneg %p157
      // Predicated region
      $region9: #{tpu_custom_call.1} parent=5 // pred_check
        _
      $region10: #{tpu_custom_call.1} parent=5 // pred_check_branch
        %160 = sbr.rel (%p157) target = $region12
      $region11: #{tpu_custom_call.1} parent=5 // pred_region
        %s161 = ssub.s32 %s18, 1
      $region12: #{tpu_custom_call.1} parent=5 // pred_fallthru
        _
      %p162 = scmp.lt.s32.totalorder %s18, 2
      // Predicated region
      $region13: #{tpu_custom_call.1} parent=5 // pred_check
        %p163 = pneg %p162
      $region14: #{tpu_custom_call.1} parent=5 // pred_check_branch
        %165 = sbr.rel (%p163) target = $region16
      $region15: #{tpu_custom_call.1} parent=5 // pred_region
        // Predicated region
        $region17: #{tpu_custom_call.1} parent=15 // pred_check
          %p166 = pneg %p59
        $region18: #{tpu_custom_call.1} parent=15 // pred_check_branch
          %168 = sbr.rel (%p166) target = $region20
        $region19: #{tpu_custom_call.1} parent=15 // pred_region
          %s169 = sand.u32 %s49, 1
          %s170 = scalar_lea.sflag [#allocation6], %s169
          %s171 = sand.u32 %s49, 1
          %s172 = smul.addr %s171, 8
          %s173 = scalar_lea.vmem [#allocation5], %s172
          %s175 = ssub.s32 128, 128
          %176 = vsyncadd %s170, %s175
          %s177 = smul.addr %s25, 2
          %s178 = sadd.s32 %s26, %s177
          %s179 = smul.addr %s178, 128
          %s180 = scalar_lea.hbm %s0, %s179
          %s182 = sshll.u32 %s173, 4
          %s183 = int_to_ptr.vmem [resolvable:$true] %s182
          %185 = dma.hbm_to_vmem [thread:$0]  %s180, 128, %s183, %s170
        $region20: #{tpu_custom_call.1} parent=15 // pred_fallthru
          _
        // Predicated region
        $region21: #{tpu_custom_call.1} parent=15 // pred_check
          %p186 = pneg %p87
        $region22: #{tpu_custom_call.1} parent=15 // pred_check_branch
          %188 = sbr.rel (%p186) target = $region24
        $region23: #{tpu_custom_call.1} parent=15 // pred_region
          %s189 = sand.u32 %s77, 1
          %s190 = scalar_lea.sflag [#allocation9], %s189
          %s191 = sand.u32 %s77, 1
          %s192 = smul.addr %s191, 1024
          %s193 = scalar_lea.vmem [#allocation8], %s192
          %s194 = smul.u32 128, %s27
          %s196 = ssub.s32 16384, 16384
          %197 = vsyncadd %s190, %s196
          %s198 = smul.addr %s194, 2
          %s199 = sadd.s32 %s26, %s198
          %s200 = smul.addr %s199, 128
          %s201 = scalar_lea.hbm %s1, %s200
          %s202 = sshll.u32 %s193, 4
          %s203 = int_to_ptr.vmem [resolvable:$true] %s202
          %208 = dma.hbm_to_vmem [thread:$0]  %s201, 16384, %s203, %s190, 256, 128, 8
        $region24: #{tpu_custom_call.1} parent=15 // pred_fallthru
          _
        // Predicated region
        $region25: #{tpu_custom_call.1} parent=15 // pred_check
          %p209 = pneg %p113
        $region26: #{tpu_custom_call.1} parent=15 // pred_check_branch
          %211 = sbr.rel (%p209) target = $region28
        $region27: #{tpu_custom_call.1} parent=15 // pred_region
          %p212 = scmp.lt.s32.totalorder %s26, 1
          %s213 = scalar_select %p212, %s26, 1
          %s214 = scalar_lea.vmem %s2, %s213
        $region28: #{tpu_custom_call.1} parent=15 // pred_fallthru
          _
      $region16: #{tpu_custom_call.1} parent=5 // pred_fallthru
        _
      %p215 = scmp.le.s32.totalorder 1, %s18
      %p216 = scmp.lt.s32.totalorder %s18, 3
      %p217 = pnand %p215, %p216
      %p218 = pneg %p217
      // Predicated region
      $region29: #{tpu_custom_call.1} parent=5 // pred_check
        _
      $region30: #{tpu_custom_call.1} parent=5 // pred_check_branch
        %220 = sbr.rel (%p217) target = $region32
      $region31: #{tpu_custom_call.1} parent=5 // pred_region
        %s221 = ssub.s32 %s18, 1
        %s222 = sand.u32 %s52, 1
        %s223 = scalar_lea.sflag [#allocation6], %s222
        %s224 = sand.u32 %s52, 1
        %s225 = smul.addr %s224, 8
        %s226 = scalar_lea.vmem [#allocation5], %s225
        // Predicated region
        $region33: #{tpu_custom_call.1} parent=31 // pred_check
          %p227 = pneg %p65
        $region34: #{tpu_custom_call.1} parent=31 // pred_check_branch
          %229 = sbr.rel (%p227) target = $region36
        $region35: #{tpu_custom_call.1} parent=31 // pred_region
          %230 = dma.done %s223, 128
        $region36: #{tpu_custom_call.1} parent=31 // pred_fallthru
          _
        %s231 = sand.u32 %s80, 1
        %s232 = scalar_lea.sflag [#allocation9], %s231
        %s233 = sand.u32 %s80, 1
        %s234 = smul.addr %s233, 1024
        %s235 = scalar_lea.vmem [#allocation8], %s234
        // Predicated region
        $region37: #{tpu_custom_call.1} parent=31 // pred_check
          %p236 = pneg %p93
        $region38: #{tpu_custom_call.1} parent=31 // pred_check_branch
          %238 = sbr.rel (%p236) target = $region40
        $region39: #{tpu_custom_call.1} parent=31 // pred_region
          %239 = dma.done %s232, 16384
        $region40: #{tpu_custom_call.1} parent=31 // pred_fallthru
          _
        %s240 = sand.u32 %s52, 1
        %s241 = scalar_lea.sflag [#allocation6], %s240
        %s242 = sand.u32 %s52, 1
        %s243 = smul.addr %s242, 8
        %s244 = scalar_lea.vmem [#allocation5], %s243
        %p245 = pneg %p65
        %p246 = pneg %p62
        %s247 = sand.u32 %s80, 1
        %s248 = scalar_lea.sflag [#allocation9], %s247
        %s249 = sand.u32 %s80, 1
        %s250 = smul.addr %s249, 1024
        %s251 = scalar_lea.vmem [#allocation8], %s250
        %p252 = pneg %p93
        %p253 = pneg %p90
        %p254 = scmp.lt.s32.totalorder %s29, 1
        %s255 = scalar_select %p254, %s29, 1
        %s256 = scalar_lea.vmem %s2, %s255
        %p257 = pneg %p119
        %p258 = pneg %p116
        %p259 = pneg %p147
        %p260 = pneg %p144
        %s261 = sand.u32 %s134, 1
        %s262 = scalar_lea.sflag [#allocation7], %s261
        %s263 = sand.u32 %s134, 1
        %s264 = smul.addr %s263, 8
        %s265 = scalar_lea.vmem [#allocation10], %s264
        %s266 = smul.u32 128, %s30
        %p267 = scmp.lt.s32.totalorder %s29, 1
        %s268 = scalar_select %p267, %s29, 1
        %s269 = scalar_lea.vmem %s2, %s268
        %p270 = scmp.eq.s32.totalorder %s30, 0
        // Predicated region
        $region41: #{tpu_custom_call.1} parent=31 // pred_check
          %p271 = pneg %p270
        $region42: #{tpu_custom_call.1} parent=31 // pred_check_branch
          %273 = sbr.rel (%p271) target = $region44
        $region43: #{tpu_custom_call.1} parent=31 // pred_region
          %v274 = vld [vmem:[%s269] sm:$0x1]
          %v275 = vrcp.pop %v274
          %v276 = vmul.f32 1.0, %v275
          %277 = vst [vmem:[#allocation4] sm:$0x1] %v276
          %v278 = vld [vmem:[%s226] sm:$0xff]
          %v280 = vlaneseq
          %v281 = vshrl.u32 %v280, 7
          %v282 = vsub.s32 0, %v281
          %v283 = vrot.slane %v276, %v282
          %v285 = vmul.f32 %v278, %v283
          %286 = vst [vmem:[#allocation3] sm:$0xff] %v285
        $region44: #{tpu_custom_call.1} parent=31 // pred_fallthru
          _
        %v287 = vld [vmem:[#allocation3] sm:$0xff]
        %v288 = vld [vmem:[#allocation4] sm:$0x1]
        loop: start=0, step=1, limit=64
        $region45: #{tpu_custom_call.1} parent=31 // loop_pre_header
          _
        $region46: #{tpu_custom_call.1} parent=31 // loop_header
          %s290 = sphi 0, %s294
          %p291 = scmp.ge.s32.totalorder %s290, 64
          %v295 = vphi 0.0, %v483
        $region47: #{tpu_custom_call.1} parent=31 // loop_header_branch
          %293 = sbr.rel (%p291) target = $region51
        $region48: #{tpu_custom_call.1} parent=31 // loop_body
          %s296 = smul.u32 %s290, 16
          %s297 = scalar_lea.vmem %s235, %s296 [#allocation8]
          %v298 = vld [vmem:[%s297] sm:$0xff]
          %v299 = vld [vmem:[%s297 + $0x8] sm:$0xff]
          %v301 = vlaneseq
          %v302 = vshrl.u32 %v301, 7
          %v303 = vsub.s32 0, %v302
          %v304 = vrot.slane %v288, %v303
          %v306 = vmul.f32 %v298, %v304
          %v307 = vmul.f32 %v299, %v304
          %v308 = vlaneseq
          %v309 = vshrl.u32 %v308, 7
          %v310 = vsub.s32 0, %v309
          %v311 = vrot.slane %v306, %v310
          %v312 = vsub.f32 %v287, %v311
          %v313 = vmul.f32 %v312, %v312
          %v314 = vmul.f32 %v313, 0.035677407
          %v315 = vadd.f32 %v314, 0.7978846
          %v316 = vmul.f32 %v312, %v315
          %v317 = vtanh.pop %v316
          %v318 = vadd.f32 %v295, %v317
          %v319 = vlaneseq
          %v320 = vshrl.u32 %v319, 7
          %v321 = vsub.s32 1, %v320
          %v322 = vrot.slane %v306, %v321
          %v323 = vsub.f32 %v287, %v322
          %v324 = vmul.f32 %v323, %v323
          %v325 = vmul.f32 %v324, 0.035677407
          %v326 = vadd.f32 %v325, 0.7978846
          %v327 = vmul.f32 %v323, %v326
          %v328 = vtanh.pop %v327
          %v329 = vadd.f32 %v318, %v328
          %v330 = vlaneseq
          %v331 = vshrl.u32 %v330, 7
          %v332 = vsub.s32 2, %v331
          %v333 = vrot.slane %v306, %v332
          %v334 = vsub.f32 %v287, %v333
          %v335 = vmul.f32 %v334, %v334
          %v336 = vmul.f32 %v335, 0.035677407
          %v337 = vadd.f32 %v336, 0.7978846
          %v338 = vmul.f32 %v334, %v337
          %v339 = vtanh.pop %v338
          %v340 = vadd.f32 %v329, %v339
          %v341 = vlaneseq
          %v342 = vshrl.u32 %v341, 7
          %v343 = vsub.s32 3, %v342
          %v344 = vrot.slane %v306, %v343
          %v345 = vsub.f32 %v287, %v344
          %v346 = vmul.f32 %v345, %v345
          %v347 = vmul.f32 %v346, 0.035677407
          %v348 = vadd.f32 %v347, 0.7978846
          %v349 = vmul.f32 %v345, %v348
          %v350 = vtanh.pop %v349
          %v351 = vadd.f32 %v340, %v350
          %v352 = vlaneseq
          %v353 = vshrl.u32 %v352, 7
          %v354 = vsub.s32 4, %v353
          %v355 = vrot.slane %v306, %v354
          %v356 = vsub.f32 %v287, %v355
          %v357 = vmul.f32 %v356, %v356
          %v358 = vmul.f32 %v357, 0.035677407
          %v359 = vadd.f32 %v358, 0.7978846
          %v360 = vmul.f32 %v356, %v359
          %v361 = vtanh.pop %v360
          %v362 = vadd.f32 %v351, %v361
          %v363 = vlaneseq
          %v364 = vshrl.u32 %v363, 7
          %v365 = vsub.s32 5, %v364
          %v366 = vrot.slane %v306, %v365
          %v367 = vsub.f32 %v287, %v366
          %v368 = vmul.f32 %v367, %v367
          %v369 = vmul.f32 %v368, 0.035677407
          %v370 = vadd.f32 %v369, 0.7978846
          %v371 = vmul.f32 %v367, %v370
          %v372 = vtanh.pop %v371
          %v373 = vadd.f32 %v362, %v372
          %v374 = vlaneseq
          %v375 = vshrl.u32 %v374, 7
          %v376 = vsub.s32 6, %v375
          %v377 = vrot.slane %v306, %v376
          %v378 = vsub.f32 %v287, %v377
          %v379 = vmul.f32 %v378, %v378
          %v380 = vmul.f32 %v379, 0.035677407
          %v381 = vadd.f32 %v380, 0.7978846
          %v382 = vmul.f32 %v378, %v381
          %v383 = vtanh.pop %v382
          %v384 = vadd.f32 %v373, %v383
          %v385 = vlaneseq
          %v386 = vshrl.u32 %v385, 7
          %v387 = vsub.s32 7, %v386
          %v388 = vrot.slane %v306, %v387
          %v389 = vsub.f32 %v287, %v388
          %v390 = vmul.f32 %v389, %v389
          %v391 = vmul.f32 %v390, 0.035677407
          %v392 = vadd.f32 %v391, 0.7978846
          %v393 = vmul.f32 %v389, %v392
          %v394 = vtanh.pop %v393
          %v395 = vadd.f32 %v384, %v394
          %v396 = vlaneseq
          %v397 = vshrl.u32 %v396, 7
          %v398 = vsub.s32 0, %v397
          %v399 = vrot.slane %v307, %v398
          %v400 = vsub.f32 %v287, %v399
          %v401 = vmul.f32 %v400, %v400
          %v402 = vmul.f32 %v401, 0.035677407
          %v403 = vadd.f32 %v402, 0.7978846
          %v404 = vmul.f32 %v400, %v403
          %v405 = vtanh.pop %v404
          %v406 = vadd.f32 %v395, %v405
          %v407 = vlaneseq
          %v408 = vshrl.u32 %v407, 7
          %v409 = vsub.s32 1, %v408
          %v410 = vrot.slane %v307, %v409
          %v411 = vsub.f32 %v287, %v410
          %v412 = vmul.f32 %v411, %v411
          %v413 = vmul.f32 %v412, 0.035677407
          %v414 = vadd.f32 %v413, 0.7978846
          %v415 = vmul.f32 %v411, %v414
          %v416 = vtanh.pop %v415
          %v417 = vadd.f32 %v406, %v416
          %v418 = vlaneseq
          %v419 = vshrl.u32 %v418, 7
          %v420 = vsub.s32 2, %v419
          %v421 = vrot.slane %v307, %v420
          %v422 = vsub.f32 %v287, %v421
          %v423 = vmul.f32 %v422, %v422
          %v424 = vmul.f32 %v423, 0.035677407
          %v425 = vadd.f32 %v424, 0.7978846
          %v426 = vmul.f32 %v422, %v425
          %v427 = vtanh.pop %v426
          %v428 = vadd.f32 %v417, %v427
          %v429 = vlaneseq
          %v430 = vshrl.u32 %v429, 7
          %v431 = vsub.s32 3, %v430
          %v432 = vrot.slane %v307, %v431
          %v433 = vsub.f32 %v287, %v432
          %v434 = vmul.f32 %v433, %v433
          %v435 = vmul.f32 %v434, 0.035677407
          %v436 = vadd.f32 %v435, 0.7978846
          %v437 = vmul.f32 %v433, %v436
          %v438 = vtanh.pop %v437
          %v439 = vadd.f32 %v428, %v438
          %v440 = vlaneseq
          %v441 = vshrl.u32 %v440, 7
          %v442 = vsub.s32 4, %v441
          %v443 = vrot.slane %v307, %v442
          %v444 = vsub.f32 %v287, %v443
          %v445 = vmul.f32 %v444, %v444
          %v446 = vmul.f32 %v445, 0.035677407
          %v447 = vadd.f32 %v446, 0.7978846
          %v448 = vmul.f32 %v444, %v447
          %v449 = vtanh.pop %v448
          %v450 = vadd.f32 %v439, %v449
          %v451 = vlaneseq
          %v452 = vshrl.u32 %v451, 7
          %v453 = vsub.s32 5, %v452
          %v454 = vrot.slane %v307, %v453
          %v455 = vsub.f32 %v287, %v454
          %v456 = vmul.f32 %v455, %v455
          %v457 = vmul.f32 %v456, 0.035677407
          %v458 = vadd.f32 %v457, 0.7978846
          %v459 = vmul.f32 %v455, %v458
          %v460 = vtanh.pop %v459
          %v461 = vadd.f32 %v450, %v460
          %v462 = vlaneseq
          %v463 = vshrl.u32 %v462, 7
          %v464 = vsub.s32 6, %v463
          %v465 = vrot.slane %v307, %v464
          %v466 = vsub.f32 %v287, %v465
          %v467 = vmul.f32 %v466, %v466
          %v468 = vmul.f32 %v467, 0.035677407
          %v469 = vadd.f32 %v468, 0.7978846
          %v470 = vmul.f32 %v466, %v469
          %v471 = vtanh.pop %v470
          %v472 = vadd.f32 %v461, %v471
          %v473 = vlaneseq
          %v474 = vshrl.u32 %v473, 7
          %v475 = vsub.s32 7, %v474
          %v476 = vrot.slane %v307, %v475
          %v477 = vsub.f32 %v287, %v476
          %v478 = vmul.f32 %v477, %v477
          %v479 = vmul.f32 %v478, 0.035677407
          %v480 = vadd.f32 %v479, 0.7978846
          %v481 = vmul.f32 %v477, %v480
          %v482 = vtanh.pop %v481
          %v483 = vadd.f32 %v472, %v482
        $region49: #{tpu_custom_call.1} parent=31 // loop_footer
          %s294 = sadd.s32 1, %s290
        $region50: #{tpu_custom_call.1} parent=31 // loop_footer_branch
          %289 = sbr.rel target = $region46
        $region51: #{tpu_custom_call.1} parent=31 // loop_exit
          _
        %v484 = vmul.f32 %v295, 0.0009765625
        %v485 = vmax.f32 %v484, -0.999998
        %v486 = vmin.f32 %v485, 0.999998
        %v487 = vsub.f32 1.0, %v486
        %v488 = vadd.f32 %v486, 1.0
        %v489 = vmul.f32 %v487, %v488
        %v490 = vlog2.pop %v489
        %v491 = vmul.f32 %v490, 0.6931472
        %v492 = vsub.f32 0.0, %v491
        %v493 = vsub.f32 %v492, 2.5
        %v494 = vmul.f32 %v493, 2.8102264e-08
        %v495 = vadd.f32 %v494, 3.4327394e-07
        %v496 = vmul.f32 %v495, %v493
        %v497 = vadd.f32 %v496, -3.5233877e-06
        %v498 = vmul.f32 %v497, %v493
        %v499 = vadd.f32 %v498, -4.3915065e-06
        %v500 = vmul.f32 %v499, %v493
        %v501 = vadd.f32 %v500, 0.00021858087
        %v502 = vmul.f32 %v501, %v493
        %v503 = vadd.f32 %v502, -0.001253725
        %v504 = vmul.f32 %v503, %v493
        %v505 = vadd.f32 %v504, -0.0041776816
        %v506 = vmul.f32 %v505, %v493
        %v507 = vadd.f32 %v506, 0.24664073
        %v508 = vmul.f32 %v507, %v493
        %v509 = vadd.f32 %v508, 1.5014094
        %v510 = vrsqrt.pop %v492
        %v511 = vmul.f32 %v492, %v510
        %vm512 = vcmp.eq.f32.partialorder %v492, inf
        %v513 = vsel %vm512, %v492, %v511
        %vm514 = vcmp.eq.f32.partialorder %v492, 0.0
        %v515 = vand.u32 %v492, 2147483648
        %v516 = vsel %vm514, %v515, %v513
        %v517 = vsub.f32 %v516, 3.0
        %v518 = vmul.f32 %v517, -0.00020021426
        %v519 = vadd.f32 %v518, 0.00010095056
        %v520 = vmul.f32 %v519, %v517
        %v521 = vadd.f32 %v520, 0.0013493432
        %v522 = vmul.f32 %v521, %v517
        %v523 = vadd.f32 %v522, -0.0036734284
        %v524 = vmul.f32 %v523, %v517
        %v525 = vadd.f32 %v524, 0.0057395077
        %v526 = vmul.f32 %v525, %v517
        %v527 = vadd.f32 %v526, -0.0076224613
        %v528 = vmul.f32 %v527, %v517
        %v529 = vadd.f32 %v528, 0.0094388705
        %v530 = vmul.f32 %v529, %v517
        %v531 = vadd.f32 %v530, 1.001674
        %v532 = vmul.f32 %v531, %v517
        %v533 = vadd.f32 %v532, 2.8329768
        %vm534 = vcmp.lt.f32.partialorder %v492, 5.0
        %v535 = vsel %vm534, %v509, %v533
        %v536 = vmul.f32 %v535, %v486
        %v537 = vmul.f32 %v536, 1.4142135
        %538 = vst [vmem:[%s265] sm:$0xff] %v537
        %s539 = sand.u32 %s134, 1
        %s540 = scalar_lea.sflag [#allocation7], %s539
        %s541 = sand.u32 %s134, 1
        %s542 = smul.addr %s541, 8
        %s543 = scalar_lea.vmem [#allocation10], %s542
        // Predicated region
        $region52: #{tpu_custom_call.1} parent=31 // pred_check
          %p544 = pneg %p144
        $region53: #{tpu_custom_call.1} parent=31 // pred_check_branch
          %546 = sbr.rel (%p544) target = $region55
        $region54: #{tpu_custom_call.1} parent=31 // pred_region
          %s548 = ssub.s32 128, 128
          %549 = vsyncadd %s540, %s548
          %s550 = smul.addr %s28, 2
          %s551 = sadd.s32 %s29, %s550
          %s552 = smul.addr %s551, 128
          %s553 = scalar_lea.hbm %s3, %s552
          %s555 = sshll.u32 %s543, 4
          %s556 = int_to_ptr.vmem [resolvable:$true] %s555
          %558 = dma.vmem_to_hbm [thread:$0]  %s556, 128, %s553, %s540
        $region55: #{tpu_custom_call.1} parent=31 // pred_fallthru
          _
      $region32: #{tpu_custom_call.1} parent=5 // pred_fallthru
        _
      %p559 = scmp.le.s32.totalorder 2, %s18
      // Predicated region
      $region56: #{tpu_custom_call.1} parent=5 // pred_check
        %p560 = pneg %p559
      $region57: #{tpu_custom_call.1} parent=5 // pred_check_branch
        %562 = sbr.rel (%p560) target = $region59
      $region58: #{tpu_custom_call.1} parent=5 // pred_region
        %s563 = ssub.s32 %s18, 2
        // Predicated region
        $region60: #{tpu_custom_call.1} parent=58 // pred_check
          %p564 = pneg %p150
        $region61: #{tpu_custom_call.1} parent=58 // pred_check_branch
          %566 = sbr.rel (%p564) target = $region63
        $region62: #{tpu_custom_call.1} parent=58 // pred_region
          %s567 = sand.u32 %s135, 1
          %s568 = scalar_lea.sflag [#allocation7], %s567
          %s569 = sand.u32 %s135, 1
          %s570 = smul.addr %s569, 8
          %s571 = scalar_lea.vmem [#allocation10], %s570
          %572 = dma.done %s568, 128
        $region63: #{tpu_custom_call.1} parent=58 // pred_fallthru
          _
      $region59: #{tpu_custom_call.1} parent=5 // pred_fallthru
        _
    $region6: #{tpu_custom_call.1} parent=1 // loop_footer
      %s22 = sadd.s32 1, %s18
    $region7: #{tpu_custom_call.1} parent=1 // loop_footer_branch
      %17 = sbr.rel target = $region3
    $region8: #{tpu_custom_call.1} parent=1 // loop_exit
      _
    %573 = vsyncpa [#allocation6], 1
    %s574 = scalar_lea.sflag [#allocation6], 1
    %575 = vsyncpa %s574, 1
    %576 = vsyncpa [#allocation9], 1
    %s577 = scalar_lea.sflag [#allocation9], 1
    %578 = vsyncpa %s577, 1
    %579 = vsyncpa [#allocation7], 1
    %s580 = scalar_lea.sflag [#allocation7], 1
    %581 = vsyncpa %s580, 1

</llo_original>
